<compile_context>
chip_gen: v6e
topology: v6e:2x2x1
jax: 0.10.0
libtpu: 0.0.40
codegen_flags: <defaults>
</compile_context>

<pallas_src>
import functools

import numpy as np

import jax
import jax.numpy as jnp
from jax import lax
from jax.experimental import pallas as pl
from jax.experimental.pallas import tpu as pltpu

NEG_INF = -9e16  # matches the PyTorch reference's connectivity-mask constant


def _gae1_kernel(x_ref, adj_ref, w_ref, a_ref,          # inputs
                 xbar_ref, h2_ref,                       # outputs
                 prev_buf, h_buf, tgt_buf,               # scratch
                 *, slope, tq, n_layers, approx_softmax, compute_dtype):
    l = pl.program_id(0)          # layer index (outer, sequential)
    i = pl.program_id(1)          # query-row tile index (inner)

    w = w_ref[0]                  # (f_pad, f_pad) current layer's zero-padded weight
    a = a_ref[0]                  # (2,     f_pad) row 0 = a_src, row 1 = a_tgt

    # ---- once per layer: h = prev @ W and the full target-score row ------------
    @pl.when(i == 0)
    def _():
        @pl.when(l == 0)
        def _():
            prev_buf[...] = x_ref[...]                    # layer-1 input is x
        h = jnp.dot(prev_buf[...].astype(compute_dtype), w.astype(compute_dtype),
                    preferred_element_type=jnp.float32)   # (N, f_pad)  MXU
        h_buf[...] = h
        # target_scores[j] = h[j] . a_tgt  ->  (1, N) row  (MXU, no transpose)
        tgt_buf[...] = lax.dot_general(
            a[1:2, :].astype(compute_dtype), h.astype(compute_dtype),
            dimension_numbers=(((1,), (1,)), ((), ())),
            preferred_element_type=jnp.float32)

    # ---- per query-row tile: masked softmax attention + h_prime ----------------
    row0 = pl.multiple_of(i * tq, tq)
    h_all = h_buf[...]                                    # (N,  f_pad)
    h_rows = h_buf[pl.ds(row0, tq), :]                    # (TQ, f_pad)

    # source_scores[i] = h[i] . a_src  ->  (TQ, 1) column  (MXU)
    src = lax.dot_general(
        h_rows.astype(compute_dtype), a[0:1, :].astype(compute_dtype),
        dimension_numbers=(((1,), (1,)), ((), ())),
        preferred_element_type=jnp.float32)

    e = src + tgt_buf[...]                                # (TQ, N)
    e = jnp.maximum(e, slope * e)                         # LeakyReLU(slope), slope < 1
    e = jnp.where(adj_ref[...] != 0, e, jnp.float32(NEG_INF))   # scalar-splat mask

    # numerically-stable softmax along the last axis (== F.softmax(e, dim=-1))
    m = jnp.max(e, axis=-1, keepdims=True)
    p = jnp.exp(e - m)
    denom = jnp.sum(p, axis=-1, keepdims=True)
    if approx_softmax:
        attn = p * pl.reciprocal(denom, approx=True)      # EUP slot, approximate rows
    else:
        attn = p / denom                                  # exact, matches PyTorch

    h_prime = jnp.dot(attn.astype(compute_dtype), h_all.astype(compute_dtype),
                      preferred_element_type=jnp.float32)  # (TQ, f_pad)  MXU

    # This tile's output rows become the next layer's input rows.  h for the current
    # layer was already snapshotted into h_buf, so overwriting prev_buf is safe.
    prev_buf[pl.ds(row0, tq), :] = h_prime

    @pl.when(l == 1)
    def _():
        h2_ref[pl.ds(row0, tq), :] = h_prime              # layer-2 output is returned

    @pl.when(l == n_layers - 1)
    def _():
        xbar_ref[pl.ds(row0, tq), :] = h_prime            # layer-4 output is returned


def _round_up(x, m):
    return ((x + m - 1) // m) * m


def gae1_forward(x, adj, params, slope=0.2, *, approx_softmax=False,
                 use_bf16_matmul=False):
    """Fused GAE1 forward (eval mode). Returns (x_bar, h2)."""
    n, n_feat = x.shape
    n_layers = len(params)
    F2 = params[1][0].shape[1]

    # Pad every feature dim to one lane-dense width.  Zero padding is exact: padded
    # weight rows/cols are zero, so padded h columns stay zero through all layers.
    f_max = max([n_feat] + [w.shape[1] for w, _ in params])
    f_pad = _round_up(f_max, 128)

    # Row-tile size / padded node count.  Padded rows carry an all-zero adjacency
    # mask, so they never influence real rows and are sliced off at the end.
    if n <= 512:
        tq = _round_up(n, 8)
        n_pad = tq
    else:
        tq = 256
        n_pad = _round_up(n, tq)
    n_tiles = n_pad // tq

    x_pad = jnp.zeros((n_pad, f_pad), jnp.float32).at[:n, :n_feat].set(
        x.astype(jnp.float32))
    adj_mask = jnp.zeros((n_pad, n_pad), jnp.int8).at[:n, :n].set(
        (adj > 0).astype(jnp.int8))

    w_stack = jnp.zeros((n_layers, f_pad, f_pad), jnp.float32)
    a_stack = jnp.zeros((n_layers, 2, f_pad), jnp.float32)
    for li, (w, a) in enumerate(params):
        f_in, f_out = w.shape
        w_stack = w_stack.at[li, :f_in, :f_out].set(w.astype(jnp.float32))
        a_flat = a.reshape(2 * f_out).astype(jnp.float32)
        a_stack = a_stack.at[li, 0, :f_out].set(a_flat[:f_out])    # a_src
        a_stack = a_stack.at[li, 1, :f_out].set(a_flat[f_out:])    # a_tgt

    compute_dtype = jnp.bfloat16 if use_bf16_matmul else jnp.float32

    kernel = functools.partial(
        _gae1_kernel, slope=slope, tq=tq, n_layers=n_layers,
        approx_softmax=approx_softmax, compute_dtype=compute_dtype)

    # ---- explicit VMEM budget (with headroom), clamped under v7x's 64 MiB -------
    f32 = 4
    resident = f32 * (3 * n_pad * f_pad      # x_pad, prev_buf, h_buf
                      + 2 * n_pad * f_pad    # output slabs (x_bar, h2)
                      + n_pad)               # tgt row
    streamed = 2 * (tq * n_pad               # int8 adj tiles, double-buffered
                    + f32 * (f_pad * f_pad + 2 * f_pad))   # W_l / a_l blocks
    per_tile = f32 * 4 * tq * n_pad          # e / p / attn temporaries
    vmem_limit = int(min(max(2 * (resident + streamed + per_tile), 32 << 20), 64 << 20))

    # ---- advisory cost estimate --------------------------------------------------
    flops = n_layers * (2 * n_pad * f_pad * f_pad          # h = prev @ W
                        + 4 * n_pad * f_pad                # src / tgt score dots
                        + 6 * n_pad * n_pad                # leakyrelu + mask + softmax
                        + 2 * n_pad * n_pad * f_pad)       # attn @ h
    trans = n_layers * (n_pad * n_pad + n_pad)
    bytes_acc = int(x_pad.size * 4 + n_layers * adj_mask.size
                    + w_stack.size * 4 + a_stack.size * 4 + 2 * n_pad * f_pad * 4)

    grid_spec = pltpu.PrefetchScalarGridSpec(
        num_scalar_prefetch=0,
        grid=(n_layers, n_tiles),
        in_specs=[
            pl.BlockSpec((n_pad, f_pad), lambda l, i: (0, 0)),        # x: resident
            pl.BlockSpec((tq, n_pad), lambda l, i: (i, 0)),           # adj rows: streamed
            pl.BlockSpec((1, f_pad, f_pad), lambda l, i: (l, 0, 0)),  # W_l: per layer
            pl.BlockSpec((1, 2, f_pad), lambda l, i: (l, 0, 0)),      # a_l: per layer
        ],
        out_specs=(
            pl.BlockSpec((n_pad, f_pad), lambda l, i: (0, 0)),        # x_bar slab
            pl.BlockSpec((n_pad, f_pad), lambda l, i: (0, 0)),        # h2 slab
        ),
        scratch_shapes=[
            pltpu.VMEM((n_pad, f_pad), jnp.float32),   # prev_buf (layer input / output)
            pltpu.VMEM((n_pad, f_pad), jnp.float32),   # h_buf    (h = prev @ W)
            pltpu.VMEM((1, n_pad), jnp.float32),       # tgt_buf  (target-score row)
        ],
    )

    xbar_pad, h2_pad = pl.pallas_call(
        kernel,
        grid_spec=grid_spec,
        out_shape=(jax.ShapeDtypeStruct((n_pad, f_pad), jnp.float32),
                   jax.ShapeDtypeStruct((n_pad, f_pad), jnp.float32)),
        compiler_params=pltpu.CompilerParams(
            # Row-tile axis kept "arbitrary": the fused design carries cross-tile state
            # in per-core scratch, so core-parallel sharding would be incorrect.
            dimension_semantics=("arbitrary", "arbitrary"),
            vmem_limit_bytes=vmem_limit),
        cost_estimate=pl.CostEstimate(
            flops=flops, transcendentals=trans, bytes_accessed=bytes_acc),
    )(x_pad, adj_mask, w_stack, a_stack)

    return xbar_pad[:n, :n_feat], h2_pad[:n, :F2]


# ----------------------------- reference / init ----------------------------------

def gae1_reference(x, adj, params, slope=0.2):
    """Pure-JAX reference mirroring the PyTorch module (eval mode)."""
    hp = lax.Precision.HIGHEST
    h = x
    outs = []
    for w, a in params:
        f_out = w.shape[1]
        hw = jnp.dot(h, w, precision=hp)
        src = jnp.dot(hw, a[:f_out, :], precision=hp)
        tgt = jnp.dot(hw, a[f_out:, :], precision=hp)
        e = src + tgt.T
        e = jnp.where(e > 0, e, slope * e)
        e = jnp.where(adj > 0, e, NEG_INF)
        attn = jax.nn.softmax(e, axis=-1)
        h = jnp.dot(attn, hw, precision=hp)
        outs.append(h)
    return outs[-1], outs[1]


def xavier_normal(key, shape):
    fan_in, fan_out = shape
    std = (2.0 / (fan_in + fan_out)) ** 0.5
    return std * jax.random.normal(key, shape, dtype=jnp.float32)


def init_gae1_params(key, n_feat, F1, F2):
    """Deterministic xavier-normal init, matching nn.init.xavier_normal_ shapes."""
    dims = [(n_feat, F1), (F1, F2), (F2, F1), (F1, n_feat)]
    params = []
    for fi, fo in dims:
        key, kw, ka = jax.random.split(key, 3)
        w = xavier_normal(kw, (fi, fo))
        a = xavier_normal(ka, (2 * fo, 1))
        params.append((w, a))
    return params


if __name__ == "__main__":
    N, n_feat, F1, F2 = 16, 16, 32, 8

    key = jax.random.PRNGKey(0)
    k_params, k_x, k_adj = jax.random.split(key, 3)

    params = init_gae1_params(k_params, n_feat, F1, F2)
    x = jax.random.normal(k_x, (N, n_feat), dtype=jnp.float32)

    # random sparse-ish adjacency with self-loops
    adj = (jax.random.uniform(k_adj, (N, N)) > 0.5).astype(jnp.float32)
    adj = jnp.maximum(adj, jnp.eye(N, dtype=jnp.float32))

    x_bar, h2 = gae1_forward(x, adj, params)
    jax.block_until_ready((x_bar, h2))

    assert x_bar.shape == (N, n_feat) and h2.shape == (N, F2)
    assert bool(jnp.all(jnp.isfinite(x_bar))) and bool(jnp.all(jnp.isfinite(h2)))

    x_bar_ref, h2_ref = gae1_reference(x, adj, params)
    np.testing.assert_allclose(np.asarray(x_bar), np.asarray(x_bar_ref),
                               rtol=2e-3, atol=2e-3)
    np.testing.assert_allclose(np.asarray(h2), np.asarray(h2_ref),
                               rtol=2e-3, atol=2e-3)

    print("KERNEL_OK")
</pallas_src>

<mosaic_0001>
module attributes {stable_mosaic.version = 11 : i64} {
  func.func @_gae1_kernel(%arg0: i32, %arg1: i32, %arg2: memref<16x128xf32, #tpu.memory_space<vmem>>, %arg3: memref<16x16xi8, #tpu.memory_space<vmem>>, %arg4: memref<1x128x128xf32, #tpu.memory_space<vmem>>, %arg5: memref<1x2x128xf32, #tpu.memory_space<vmem>>, %arg6: memref<16x128xf32, #tpu.memory_space<vmem>>, %arg7: memref<16x128xf32, #tpu.memory_space<vmem>>, %arg8: memref<16x128xf32, #tpu.memory_space<vmem>>, %arg9: memref<16x128xf32, #tpu.memory_space<vmem>>, %arg10: memref<1x16xf32, #tpu.memory_space<vmem>>) attributes {dimension_semantics = [#tpu.dimension_semantics<arbitrary>, #tpu.dimension_semantics<arbitrary>], iteration_bounds = array<i64: 4, 1>, scalar_prefetch = 0 : i64, scratch_operands = 3 : i64, tpu.core_type = #tpu.core_type<tc>, window_params = [{pipeline_mode = #tpu.pipeline_mode<synchronous>, transform_indices = @transform_0, window_bounds = array<i64: 16, 128>}, {transform_indices = @transform_1, window_bounds = array<i64: 16, 16>}, {transform_indices = @transform_2, window_bounds = array<i64: 1, 128, 128>}, {transform_indices = @transform_3, window_bounds = array<i64: 1, 2, 128>}, {pipeline_mode = #tpu.pipeline_mode<synchronous>, transform_indices = @transform_4, window_bounds = array<i64: 16, 128>}, {pipeline_mode = #tpu.pipeline_mode<synchronous>, transform_indices = @transform_5, window_bounds = array<i64: 16, 128>}]} {
    %c0 = arith.constant 0 : index
    %c0_0 = arith.constant 0 : index
    %c0_1 = arith.constant 0 : index
    %0 = vector.load %arg4[%c0, %c0_0, %c0_1] : memref<1x128x128xf32, #tpu.memory_space<vmem>>, vector<1x128x128xf32>
    %1 = vector.shape_cast %0 : vector<1x128x128xf32> to vector<128x128xf32>
    %c0_2 = arith.constant 0 : index
    %c0_3 = arith.constant 0 : index
    %c0_4 = arith.constant 0 : index
    %2 = vector.load %arg5[%c0_2, %c0_3, %c0_4] : memref<1x2x128xf32, #tpu.memory_space<vmem>>, vector<1x2x128xf32>
    %3 = vector.shape_cast %2 : vector<1x2x128xf32> to vector<2x128xf32>
    %c0_i32 = arith.constant 0 : i32
    %4 = arith.cmpi eq, %arg1, %c0_i32 : i32
    %5 = arith.extui %4 : i1 to i32
    %c0_i32_5 = arith.constant 0 : i32
    %6 = arith.cmpi ne, %5, %c0_i32_5 : i32
    scf.if %6 {
      %c0_i32_21 = arith.constant 0 : i32
      %44 = arith.cmpi eq, %arg0, %c0_i32_21 : i32
      %45 = arith.extui %44 : i1 to i32
      %c0_i32_22 = arith.constant 0 : i32
      %46 = arith.cmpi ne, %45, %c0_i32_22 : i32
      scf.if %46 {
        %c0_31 = arith.constant 0 : index
        %c0_32 = arith.constant 0 : index
        %53 = vector.load %arg2[%c0_31, %c0_32] : memref<16x128xf32, #tpu.memory_space<vmem>>, vector<16x128xf32>
        %c0_33 = arith.constant 0 : index
        %c0_34 = arith.constant 0 : index
        %54 = vector.load %arg8[%c0_33, %c0_34] : memref<16x128xf32, #tpu.memory_space<vmem>>, vector<16x128xf32>
        tpu.vector_store %arg8[%c0_33, %c0_34], %53 {strides = array<i32>} : memref<16x128xf32, #tpu.memory_space<vmem>>, vector<16x128xf32>,
      } else {
      }
      %c0_23 = arith.constant 0 : index
      %c0_24 = arith.constant 0 : index
      %47 = vector.load %arg8[%c0_23, %c0_24] : memref<16x128xf32, #tpu.memory_space<vmem>>, vector<16x128xf32>
      %cst_25 = arith.constant dense<0.000000e+00> : vector<16x128xf32>
      %48 = tpu.matmul %47, %1, %cst_25 {dimension_numbers = #tpu.dot_dimension_numbers<[1], [0], [0], [1], [0, 0, 1, 1], [], []>} : vector<16x128xf32>, vector<128x128xf32>, vector<16x128xf32> -> vector<16x128xf32>
      %c0_26 = arith.constant 0 : index
      %c0_27 = arith.constant 0 : index
      %49 = vector.load %arg9[%c0_26, %c0_27] : memref<16x128xf32, #tpu.memory_space<vmem>>, vector<16x128xf32>
      tpu.vector_store %arg9[%c0_26, %c0_27], %48 {strides = array<i32>} : memref<16x128xf32, #tpu.memory_space<vmem>>, vector<16x128xf32>,
      %50 = vector.extract_strided_slice %3 {offsets = [1, 0], sizes = [1, 128], strides = [1, 1]} : vector<2x128xf32> to vector<1x128xf32>
      %cst_28 = arith.constant dense<0.000000e+00> : vector<1x16xf32>
      %51 = tpu.matmul %50, %48, %cst_28 {dimension_numbers = #tpu.dot_dimension_numbers<[1], [1], [0], [0], [0, 0, 1, 0], [], []>} : vector<1x128xf32>, vector<16x128xf32>, vector<1x16xf32> -> vector<1x16xf32>
      %c0_29 = arith.constant 0 : index
      %c0_30 = arith.constant 0 : index
      %52 = vector.load %arg10[%c0_29, %c0_30] : memref<1x16xf32, #tpu.memory_space<vmem>>, vector<1x16xf32>
      tpu.vector_store %arg10[%c0_29, %c0_30], %51 {strides = array<i32>} : memref<1x16xf32, #tpu.memory_space<vmem>>, vector<1x16xf32>,
    } else {
    }
    %c16_i32 = arith.constant 16 : i32
    %7 = arith.muli %arg1, %c16_i32 : i32
    %8 = tpu.assume_multiple %7, 16 : i32
    %c0_6 = arith.constant 0 : index
    %c0_7 = arith.constant 0 : index
    %9 = vector.load %arg9[%c0_6, %c0_7] : memref<16x128xf32, #tpu.memory_space<vmem>>, vector<16x128xf32>
    %10 = arith.index_cast %8 : i32 to index
    %c0_8 = arith.constant 0 : index
    %11 = vector.load %arg9[%10, %c0_8] : memref<16x128xf32, #tpu.memory_space<vmem>>, vector<16x128xf32>
    %12 = vector.extract_strided_slice %3 {offsets = [0, 0], sizes = [1, 128], strides = [1, 1]} : vector<2x128xf32> to vector<1x128xf32>
    %cst = arith.constant dense<0.000000e+00> : vector<16x1xf32>
    %13 = tpu.matmul %11, %12, %cst {dimension_numbers = #tpu.dot_dimension_numbers<[1], [1], [0], [0], [0, 0, 1, 0], [], []>} : vector<16x128xf32>, vector<1x128xf32>, vector<16x1xf32> -> vector<16x1xf32>
    %c0_9 = arith.constant 0 : index
    %c0_10 = arith.constant 0 : index
    %14 = vector.load %arg10[%c0_9, %c0_10] : memref<1x16xf32, #tpu.memory_space<vmem>>, vector<1x16xf32>
    %15 = vector.broadcast %13 : vector<16x1xf32> to vector<16x16xf32>
    %16 = vector.broadcast %14 : vector<1x16xf32> to vector<16x16xf32>
    %17 = arith.addf %15, %16 : vector<16x16xf32>
    %cst_11 = arith.constant 2.000000e-01 : f32
    %18 = vector.broadcast %cst_11 : f32 to vector<16x16xf32>
    %19 = arith.mulf %18, %17 : vector<16x16xf32>
    %20 = arith.maximumf %17, %19 : vector<16x16xf32>
    %c0_12 = arith.constant 0 : index
    %c0_13 = arith.constant 0 : index
    %21 = vector.load %arg3[%c0_12, %c0_13] : memref<16x16xi8, #tpu.memory_space<vmem>>, vector<16x16xi8>
    %c0_i8 = arith.constant 0 : i8
    %22 = vector.broadcast %c0_i8 : i8 to vector<16x16xi8>
    %23 = arith.cmpi ne, %21, %22 : vector<16x16xi8>
    %cst_14 = arith.constant -9.000000e+16 : f32
    %24 = vector.broadcast %cst_14 : f32 to vector<16x16xf32>
    %25 = arith.select %23, %20, %24 : vector<16x16xi1>, vector<16x16xf32>
    %cst_15 = arith.constant dense<0xFF800000> : vector<16xf32>
    %26 = vector.multi_reduction <maximumf>, %25, %cst_15 [1] : vector<16x16xf32> to vector<16xf32>
    %27 = vector.shape_cast %26 : vector<16xf32> to vector<16x1xf32>
    %28 = vector.broadcast %27 : vector<16x1xf32> to vector<16x16xf32>
    %29 = arith.subf %25, %28 : vector<16x16xf32>
    %30 = math.exp %29 : vector<16x16xf32>
    %cst_16 = arith.constant dense<0.000000e+00> : vector<16xf32>
    %31 = vector.multi_reduction <add>, %30, %cst_16 [1] : vector<16x16xf32> to vector<16xf32>
    %32 = vector.shape_cast %31 : vector<16xf32> to vector<16x1xf32>
    %33 = vector.broadcast %32 : vector<16x1xf32> to vector<16x16xf32>
    %34 = arith.divf %30, %33 : vector<16x16xf32>
    %cst_17 = arith.constant dense<0.000000e+00> : vector<16x128xf32>
    %35 = tpu.matmul %34, %9, %cst_17 {dimension_numbers = #tpu.dot_dimension_numbers<[1], [0], [0], [1], [0, 0, 1, 1], [], []>} : vector<16x16xf32>, vector<16x128xf32>, vector<16x128xf32> -> vector<16x128xf32>
    %36 = arith.index_cast %8 : i32 to index
    %c0_18 = arith.constant 0 : index
    %37 = vector.load %arg8[%36, %c0_18] : memref<16x128xf32, #tpu.memory_space<vmem>>, vector<16x128xf32>
    tpu.vector_store %arg8[%36, %c0_18], %35 {strides = array<i32>} : memref<16x128xf32, #tpu.memory_space<vmem>>, vector<16x128xf32>,
    %c1_i32 = arith.constant 1 : i32
    %38 = arith.cmpi eq, %arg0, %c1_i32 : i32
    %39 = arith.extui %38 : i1 to i32
    %c0_i32_19 = arith.constant 0 : i32
    %40 = arith.cmpi ne, %39, %c0_i32_19 : i32
    scf.if %40 {
      %44 = arith.index_cast %8 : i32 to index
      %c0_21 = arith.constant 0 : index
      %45 = vector.load %arg7[%44, %c0_21] : memref<16x128xf32, #tpu.memory_space<vmem>>, vector<16x128xf32>
      tpu.vector_store %arg7[%44, %c0_21], %35 {strides = array<i32>} : memref<16x128xf32, #tpu.memory_space<vmem>>, vector<16x128xf32>,
    } else {
    }
    %c3_i32 = arith.constant 3 : i32
    %41 = arith.cmpi eq, %arg0, %c3_i32 : i32
    %42 = arith.extui %41 : i1 to i32
    %c0_i32_20 = arith.constant 0 : i32
    %43 = arith.cmpi ne, %42, %c0_i32_20 : i32
    scf.if %43 {
      %44 = arith.index_cast %8 : i32 to index
      %c0_21 = arith.constant 0 : index
      %45 = vector.load %arg6[%44, %c0_21] : memref<16x128xf32, #tpu.memory_space<vmem>>, vector<16x128xf32>
      tpu.vector_store %arg6[%44, %c0_21], %35 {strides = array<i32>} : memref<16x128xf32, #tpu.memory_space<vmem>>, vector<16x128xf32>,
    } else {
    }
    return
  }
  func.func @transform_0(%arg0: i32, %arg1: i32) -> (i32, i32) {
    %c0_i32 = arith.constant 0 : i32
    %c0_i32_0 = arith.constant 0 : i32
    %c0_i32_1 = arith.constant 0 : i32
    return %c0_i32, %c0_i32_0 : i32, i32
  }
  func.func @transform_1(%arg0: i32, %arg1: i32) -> (i32, i32) {
    %c0_i32 = arith.constant 0 : i32
    %c0_i32_0 = arith.constant 0 : i32
    return %arg1, %c0_i32 : i32, i32
  }
  func.func @transform_2(%arg0: i32, %arg1: i32) -> (i32, i32, i32) {
    %c0_i32 = arith.constant 0 : i32
    %c0_i32_0 = arith.constant 0 : i32
    %c0_i32_1 = arith.constant 0 : i32
    return %arg0, %c0_i32, %c0_i32_0 : i32, i32, i32
  }
  func.func @transform_3(%arg0: i32, %arg1: i32) -> (i32, i32, i32) {
    %c0_i32 = arith.constant 0 : i32
    %c0_i32_0 = arith.constant 0 : i32
    %c0_i32_1 = arith.constant 0 : i32
    return %arg0, %c0_i32, %c0_i32_0 : i32, i32, i32
  }
  func.func @transform_4(%arg0: i32, %arg1: i32) -> (i32, i32) {
    %c0_i32 = arith.constant 0 : i32
    %c0_i32_0 = arith.constant 0 : i32
    %c0_i32_1 = arith.constant 0 : i32
    return %c0_i32, %c0_i32_0 : i32, i32
  }
  func.func @transform_5(%arg0: i32, %arg1: i32) -> (i32, i32) {
    %c0_i32 = arith.constant 0 : i32
    %c0_i32_0 = arith.constant 0 : i32
    %c0_i32_1 = arith.constant 0 : i32
    return %c0_i32, %c0_i32_0 : i32, i32
  }
}

</mosaic_0001>

<llo_original>
// kernel: tpu_custom_call.1
$region0: #{tpu_custom_call.1}
  #allocation0 [shape = 'u32[]', space=smem, size = 0x4, offset = 0x4, fixed_abs, tag = 'smem constant byte address 0x4 - core index']
  #allocation1 [shape = 'u32[144,128]{1,0:T(1,128)}', space=vmem, size = 0x12000, scoped, tag = 'internal scratch']
  #allocation2 [shape = 'f32[16,128]{1,0:T(8,128)}', space=vmem, size = 0x2000, scoped, tag = 'scratch operand']
  #allocation3 [shape = 'f32[16,128]{1,0:T(8,128)}', space=vmem, size = 0x2000, scoped, tag = 'scratch operand']
  #allocation4 [shape = 'f32[1,16]{1,0:T(1,128)}', space=vmem, size = 0x200, scoped, tag = 'scratch operand']
  %s0 = inlined_call_operand.hbm [shape: f32[16,128], index: 0, kind: input, shape index: {}]
  %s1 = inlined_call_operand.hbm [shape: s8[16,16], index: 1, kind: input, shape index: {}]
  %s2 = inlined_call_operand.hbm [shape: f32[4,128,128], index: 2, kind: input, shape index: {}]
  %s3 = inlined_call_operand.hbm [shape: f32[4,2,128], index: 3, kind: input, shape index: {}]
  %s4 = inlined_call_operand.hbm [shape: f32[16,128], index: 4, kind: output, shape index: {0}]
  %s5 = inlined_call_operand.hbm [shape: f32[16,128], index: 5, kind: output, shape index: {1}]
  %6 = xla_tuple %s4, %s5
  %s7 = sld [smem:[#allocation0]]
  $region89: #{tpu_custom_call.1} parent=0
    _
  %s9 = ssub.s32 1, %s7
  %s10 = scalar_select 0, %s9, %s7
  $region1: #{tpu_custom_call.1} parent=0
    #allocation5 [shape = 'u8[8192]{0}', space=vmem, size = 0x2000, scoped, tag = 'input window, operand 0, single buffered']
    #allocation6 [shape = 's32[2]{0}', space=sflag, size = 0x8, scoped, tag = 'scoped memory for tpu_custom_call.1']
    #allocation7 [shape = 's32[2]{0}', space=sflag, size = 0x8, scoped, tag = 'scoped memory for tpu_custom_call.1']
    #allocation8 [shape = 'u8[2048]{0}', space=vmem, size = 0x800, scoped, tag = 'input window, operand 1, single buffered']
    #allocation9 [shape = 's32[1]{0}', space=sflag, size = 0x4, scoped, tag = 'scoped memory for tpu_custom_call.1']
    #allocation10 [shape = 'u8[131072]{0}', space=vmem, size = 0x20000, scoped, tag = 'input window, operand 2']
    #allocation11 [shape = 'u8[2048]{0}', space=vmem, size = 0x800, scoped, tag = 'input window, operand 3']
    #allocation12 [shape = 'u8[8192]{0}', space=vmem, size = 0x2000, scoped, tag = 'output window, operand 0, single buffered']
    #allocation13 [shape = 'u8[8192]{0}', space=vmem, size = 0x2000, scoped, tag = 'output window, operand 1, single buffered']
    #allocation14 [shape = 's32[1]{0}', space=sflag, size = 0x4, scoped, tag = 'scoped memory for tpu_custom_call.1']
    %11 = vsyncpa [#allocation6], 0
    %12 = vsyncpa [#allocation9], 0
    %13 = vsyncpa [#allocation7], 0
    %14 = vsyncpa [#allocation14], 0
    loop: start=0, step=1, limit=6
    $region2: #{tpu_custom_call.1} parent=1 // loop_pre_header
      _
    $region3: #{tpu_custom_call.1} parent=1 // loop_header
      %s16 = sphi 0, %s20
      %p17 = scmp.ge.s32.totalorder %s16, 6
      %s23 = sphi 0, %s35
      %s24 = sphi 0, %s31
      %s25 = sphi 0, %s23
      %s26 = sphi 0, %s24
      %s27 = sphi 0, %s25
      %s28 = sphi 0, %s26
      %s36 = sphi 0, %s36
      %s38 = sphi 0, %s36
      %s39 = sphi 0, %s38
      %s53 = sphi 0, %s39
      %s59 = sphi 0, %s61
      %s62 = sphi 0, %s59
      %s63 = sphi 0, %s62
      %s79 = sphi 0, %s63
      %s85 = sphi 0, %s87
      %s88 = sphi 0, %s85
      %s89 = sphi 0, %s88
      %s105 = sphi 0, %s89
      %s111 = sphi 0, %s113
      %s114 = sphi 0, %s111
      %s115 = sphi 0, %s114
      %s131 = sphi 0, %s115
      %s135 = sphi 0, %s135
      %s137 = sphi 0, %s135
      %s138 = sphi 0, %s137
      %s152 = sphi 0, %s138
      %s156 = sphi 0, %s156
      %s158 = sphi 0, %s156
      %s159 = sphi 0, %s158
      %s173 = sphi 0, %s159
    $region4: #{tpu_custom_call.1} parent=1 // loop_header_branch
      %19 = sbr.rel (%p17) target = $region8
    $region5: #{tpu_custom_call.1} parent=1 // loop_body
      %s21 = ssub.s32 %s16, 1
      %s22 = ssub.s32 %s16, 2
      %s29 = sadd.s32 1, %s24
      %p30 = scmp.ge.s32.totalorder %s29, 1
      %s31 = scalar_select %p30, 0, %s29
      %s32 = sadd.s32 1, %s23
      %s33 = scalar_select %p30, %s32, %s23
      %p34 = scmp.ge.s32.totalorder %s33, 4
      %s35 = scalar_select %p34, 0, %s33
      %s37 = sadd.s32 %s36, 1
      %p40 = scmp.eq.s32.totalorder %s16, 3
      %p41 = scmp.ne.s32.totalorder %s36, %s38
      %p42 = scmp.eq.s32.totalorder %s16, 0
      %p43 = por %p41, %p42
      %p44 = scmp.ne.s32.totalorder %s36, %s38
      %p45 = scmp.eq.s32.totalorder %s21, 3
      %p46 = por %p44, %p45
      %p47 = scmp.ne.s32.totalorder %s38, %s39
      %p48 = scmp.eq.s32.totalorder %s21, 0
      %p49 = por %p47, %p48
      %p50 = scmp.ne.s32.totalorder %s38, %s39
      %p51 = scmp.eq.s32.totalorder %s22, 3
      %p52 = por %p50, %p51
      %p54 = scmp.ne.s32.totalorder %s39, %s53
      %p55 = scmp.eq.s32.totalorder %s22, 0
      %p56 = por %p54, %p55
      %s57 = ssub.s32 %s24, %s31
      %p58 = scmp.eq.s32.totalorder %s57, 0
      %s60 = sadd.s32 %s59, 1
      %s61 = scalar_select %p58, %s59, %s60
      %p64 = pneg %p58
      %p65 = scmp.eq.s32.totalorder %s16, 3
      %p66 = por %p64, %p65
      %p67 = scmp.ne.s32.totalorder %s59, %s62
      %p68 = scmp.eq.s32.totalorder %s16, 0
      %p69 = por %p67, %p68
      %p70 = scmp.ne.s32.totalorder %s59, %s62
      %p71 = scmp.eq.s32.totalorder %s21, 3
      %p72 = por %p70, %p71
      %p73 = scmp.ne.s32.totalorder %s62, %s63
      %p74 = scmp.eq.s32.totalorder %s21, 0
      %p75 = por %p73, %p74
      %p76 = scmp.ne.s32.totalorder %s62, %s63
      %p77 = scmp.eq.s32.totalorder %s22, 3
      %p78 = por %p76, %p77
      %p80 = scmp.ne.s32.totalorder %s63, %s79
      %p81 = scmp.eq.s32.totalorder %s22, 0
      %p82 = por %p80, %p81
      %s83 = ssub.s32 %s23, %s35
      %p84 = scmp.eq.s32.totalorder %s83, 0
      %s86 = sadd.s32 %s85, 1
      %s87 = scalar_select %p84, %s85, %s86
      %p90 = pneg %p84
      %p91 = scmp.eq.s32.totalorder %s16, 3
      %p92 = por %p90, %p91
      %p93 = scmp.ne.s32.totalorder %s85, %s88
      %p94 = scmp.eq.s32.totalorder %s16, 0
      %p95 = por %p93, %p94
      %p96 = scmp.ne.s32.totalorder %s85, %s88
      %p97 = scmp.eq.s32.totalorder %s21, 3
      %p98 = por %p96, %p97
      %p99 = scmp.ne.s32.totalorder %s88, %s89
      %p100 = scmp.eq.s32.totalorder %s21, 0
      %p101 = por %p99, %p100
      %p102 = scmp.ne.s32.totalorder %s88, %s89
      %p103 = scmp.eq.s32.totalorder %s22, 3
      %p104 = por %p102, %p103
      %p106 = scmp.ne.s32.totalorder %s89, %s105
      %p107 = scmp.eq.s32.totalorder %s22, 0
      %p108 = por %p106, %p107
      %s109 = ssub.s32 %s23, %s35
      %p110 = scmp.eq.s32.totalorder %s109, 0
      %s112 = sadd.s32 %s111, 1
      %s113 = scalar_select %p110, %s111, %s112
      %p116 = pneg %p110
      %p117 = scmp.eq.s32.totalorder %s16, 3
      %p118 = por %p116, %p117
      %p119 = scmp.ne.s32.totalorder %s111, %s114
      %p120 = scmp.eq.s32.totalorder %s16, 0
      %p121 = por %p119, %p120
      %p122 = scmp.ne.s32.totalorder %s111, %s114
      %p123 = scmp.eq.s32.totalorder %s21, 3
      %p124 = por %p122, %p123
      %p125 = scmp.ne.s32.totalorder %s114, %s115
      %p126 = scmp.eq.s32.totalorder %s21, 0
      %p127 = por %p125, %p126
      %p128 = scmp.ne.s32.totalorder %s114, %s115
      %p129 = scmp.eq.s32.totalorder %s22, 3
      %p130 = por %p128, %p129
      %p132 = scmp.ne.s32.totalorder %s115, %s131
      %p133 = scmp.eq.s32.totalorder %s22, 0
      %p134 = por %p132, %p133
      %s136 = sadd.s32 %s135, 1
      %p139 = scmp.eq.s32.totalorder %s16, 3
      %p140 = scmp.ne.s32.totalorder %s135, %s137
      %p141 = scmp.eq.s32.totalorder %s16, 0
      %p142 = por %p140, %p141
      %p143 = scmp.ne.s32.totalorder %s135, %s137
      %p144 = scmp.eq.s32.totalorder %s21, 3
      %p145 = por %p143, %p144
      %p146 = scmp.ne.s32.totalorder %s137, %s138
      %p147 = scmp.eq.s32.totalorder %s21, 0
      %p148 = por %p146, %p147
      %p149 = scmp.ne.s32.totalorder %s137, %s138
      %p150 = scmp.eq.s32.totalorder %s22, 3
      %p151 = por %p149, %p150
      %p153 = scmp.ne.s32.totalorder %s138, %s152
      %p154 = scmp.eq.s32.totalorder %s22, 0
      %p155 = por %p153, %p154
      %s157 = sadd.s32 %s156, 1
      %p160 = scmp.eq.s32.totalorder %s16, 3
      %p161 = scmp.ne.s32.totalorder %s156, %s158
      %p162 = scmp.eq.s32.totalorder %s16, 0
      %p163 = por %p161, %p162
      %p164 = scmp.ne.s32.totalorder %s156, %s158
      %p165 = scmp.eq.s32.totalorder %s21, 3
      %p166 = por %p164, %p165
      %p167 = scmp.ne.s32.totalorder %s158, %s159
      %p168 = scmp.eq.s32.totalorder %s21, 0
      %p169 = por %p167, %p168
      %p170 = scmp.ne.s32.totalorder %s158, %s159
      %p171 = scmp.eq.s32.totalorder %s22, 3
      %p172 = por %p170, %p171
      %p174 = scmp.ne.s32.totalorder %s159, %s173
      %p175 = scmp.eq.s32.totalorder %s22, 0
      %p176 = por %p174, %p175
      %p177 = scmp.le.s32.totalorder 1, %s16
      %p178 = scmp.lt.s32.totalorder %s16, 5
      %p179 = pnand %p177, %p178
      %p180 = pneg %p179
      // Predicated region
      $region9: #{tpu_custom_call.1} parent=5 // pred_check
        _
      $region10: #{tpu_custom_call.1} parent=5 // pred_check_branch
        %182 = sbr.rel (%p179) target = $region12
      $region11: #{tpu_custom_call.1} parent=5 // pred_region
        %s183 = ssub.s32 %s16, 1
        // Predicated region
        $region13: #{tpu_custom_call.1} parent=11 // pred_check
          %p184 = pneg %p49
        $region14: #{tpu_custom_call.1} parent=11 // pred_check_branch
          %186 = sbr.rel (%p184) target = $region16
        $region15: #{tpu_custom_call.1} parent=11 // pred_region
          %s188 = ssub.s32 256, 256
          %189 = vsyncadd [#allocation6], %s188
          %s190 = sshll.u32 [#allocation5], 4
          %s191 = int_to_ptr.vmem [resolvable:$true] %s190
          %196 = dma.hbm_to_vmem [thread:$0]  %s0, 256, %s191, [#allocation6], 128, 128, 8
        $region16: #{tpu_custom_call.1} parent=11 // pred_fallthru
          _
        // Predicated region
        $region17: #{tpu_custom_call.1} parent=11 // pred_check
          %p197 = pneg %p75
        $region18: #{tpu_custom_call.1} parent=11 // pred_check_branch
          %199 = sbr.rel (%p197) target = $region20
        $region19: #{tpu_custom_call.1} parent=11 // pred_region
          %s200 = smul.u32 2, %s26
          %s202 = ssub.s32 64, 64
          %203 = vsyncadd [#allocation9], %s202
          %s204 = smul.addr %s200, 32
          %s205 = scalar_lea.hbm %s1, %s204
          %s206 = sshll.u32 [#allocation8], 4
          %s207 = int_to_ptr.vmem [resolvable:$true] %s206
          %212 = dma.hbm_to_vmem [thread:$0]  %s205, 64, %s207, [#allocation9], 32, 32, 2
        $region20: #{tpu_custom_call.1} parent=11 // pred_fallthru
          _
      $region12: #{tpu_custom_call.1} parent=5 // pred_fallthru
        _
      %p213 = scmp.lt.s32.totalorder %s16, 4
      // Predicated region
      $region21: #{tpu_custom_call.1} parent=5 // pred_check
        %p214 = pneg %p213
      $region22: #{tpu_custom_call.1} parent=5 // pred_check_branch
        %216 = sbr.rel (%p214) target = $region24
      $region23: #{tpu_custom_call.1} parent=5 // pred_region
        // Predicated region
        $region25: #{tpu_custom_call.1} parent=23 // pred_check
          %p217 = pneg %p95
        $region26: #{tpu_custom_call.1} parent=23 // pred_check_branch
          %219 = sbr.rel (%p217) target = $region28
        $region27: #{tpu_custom_call.1} parent=23 // pred_region
          %s220 = sand.u32 %s16, 1
          %s221 = scalar_lea.sflag [#allocation6], %s220
          %s222 = sand.u32 %s85, 1
          %s223 = smul.addr %s222, 128
          %s224 = scalar_lea.vmem [#allocation10], %s223
          %s226 = ssub.s32 2048, 2048
          %227 = vsyncadd %s221, %s226
          %s228 = smul.addr %s23, 16
          %s229 = smul.addr %s228, 128
          %s230 = scalar_lea.hbm %s2, %s229
          %s231 = sshll.u32 %s224, 4
          %s232 = int_to_ptr.vmem [resolvable:$true] %s231
          %237 = dma.hbm_to_vmem [thread:$0]  %s230, 2048, %s232, %s221, 128, 128, 8
        $region28: #{tpu_custom_call.1} parent=23 // pred_fallthru
          _
        // Predicated region
        $region29: #{tpu_custom_call.1} parent=23 // pred_check
          %p238 = pneg %p121
        $region30: #{tpu_custom_call.1} parent=23 // pred_check_branch
          %240 = sbr.rel (%p238) target = $region32
        $region31: #{tpu_custom_call.1} parent=23 // pred_region
          %s241 = sand.u32 %s16, 1
          %s242 = scalar_lea.sflag [#allocation6], %s241
          %s243 = sand.u32 %s111, 1
          %s244 = smul.addr %s243, 2
          %s245 = scalar_lea.vmem [#allocation11], %s244
          %s247 = ssub.s32 32, 32
          %248 = vsyncadd %s242, %s247
          %s249 = smul.addr %s23, 32
          %s250 = scalar_lea.hbm %s3, %s249
          %s252 = sshll.u32 %s245, 4
          %s253 = int_to_ptr.vmem [resolvable:$true] %s252
          %255 = dma.hbm_to_vmem [thread:$0]  %s250, 32, %s253, %s242
        $region32: #{tpu_custom_call.1} parent=23 // pred_fallthru
          _
      $region24: #{tpu_custom_call.1} parent=5 // pred_fallthru
        _
      %p256 = scmp.le.s32.totalorder 1, %s16
      %p257 = scmp.lt.s32.totalorder %s16, 5
      %p258 = pnand %p256, %p257
      %p259 = pneg %p258
      // Predicated region
      $region33: #{tpu_custom_call.1} parent=5 // pred_check
        _
      $region34: #{tpu_custom_call.1} parent=5 // pred_check_branch
        %261 = sbr.rel (%p258) target = $region36
      $region35: #{tpu_custom_call.1} parent=5 // pred_region
        %s262 = ssub.s32 %s16, 1
        // Predicated region
        $region37: #{tpu_custom_call.1} parent=35 // pred_check
          %p263 = pneg %p49
        $region38: #{tpu_custom_call.1} parent=35 // pred_check_branch
          %265 = sbr.rel (%p263) target = $region40
        $region39: #{tpu_custom_call.1} parent=35 // pred_region
          %266 = dma.done [#allocation6], 256
        $region40: #{tpu_custom_call.1} parent=35 // pred_fallthru
          _
        // Predicated region
        $region41: #{tpu_custom_call.1} parent=35 // pred_check
          %p267 = pneg %p75
        $region42: #{tpu_custom_call.1} parent=35 // pred_check_branch
          %269 = sbr.rel (%p267) target = $region44
        $region43: #{tpu_custom_call.1} parent=35 // pred_region
          %270 = dma.done [#allocation9], 64
        $region44: #{tpu_custom_call.1} parent=35 // pred_fallthru
          _
        %s271 = sand.u32 %s21, 1
        %s272 = scalar_lea.sflag [#allocation6], %s271
        %s273 = sand.u32 %s88, 1
        %s274 = smul.addr %s273, 128
        %s275 = scalar_lea.vmem [#allocation10], %s274
        // Predicated region
        $region45: #{tpu_custom_call.1} parent=35 // pred_check
          %p276 = pneg %p101
        $region46: #{tpu_custom_call.1} parent=35 // pred_check_branch
          %278 = sbr.rel (%p276) target = $region48
        $region47: #{tpu_custom_call.1} parent=35 // pred_region
          %279 = dma.done %s272, 2048
        $region48: #{tpu_custom_call.1} parent=35 // pred_fallthru
          _
        %s280 = sand.u32 %s21, 1
        %s281 = scalar_lea.sflag [#allocation6], %s280
        %s282 = sand.u32 %s114, 1
        %s283 = smul.addr %s282, 2
        %s284 = scalar_lea.vmem [#allocation11], %s283
        // Predicated region
        $region49: #{tpu_custom_call.1} parent=35 // pred_check
          %p285 = pneg %p127
        $region50: #{tpu_custom_call.1} parent=35 // pred_check_branch
          %287 = sbr.rel (%p285) target = $region52
        $region51: #{tpu_custom_call.1} parent=35 // pred_region
          %288 = dma.done %s281, 32
        $region52: #{tpu_custom_call.1} parent=35 // pred_fallthru
          _
        %p289 = pneg %p49
        %p290 = pneg %p46
        %p291 = pneg %p75
        %p292 = pneg %p72
        %s293 = sand.u32 %s21, 1
        %s294 = scalar_lea.sflag [#allocation6], %s293
        %s295 = sand.u32 %s88, 1
        %s296 = smul.addr %s295, 128
        %s297 = scalar_lea.vmem [#allocation10], %s296
        %p298 = pneg %p101
        %p299 = pneg %p98
        %s300 = sand.u32 %s21, 1
        %s301 = scalar_lea.sflag [#allocation6], %s300
        %s302 = sand.u32 %s114, 1
        %s303 = smul.addr %s302, 2
        %s304 = scalar_lea.vmem [#allocation11], %s303
        %p305 = pneg %p127
        %p306 = pneg %p124
        %p307 = pneg %p148
        %p308 = pneg %p145
        %p309 = pneg %p169
        %p310 = pneg %p166
        %s311 = smul.u32 2, %s26
        %v314 = vld [vmem:[%s275] sm:$0xff]
        %v315 = vld [vmem:[%s275 + $0x8] sm:$0xff]
        %v316 = vld [vmem:[%s275 + $0x10] sm:$0xff]
        %v317 = vld [vmem:[%s275 + $0x18] sm:$0xff]
        %v318 = vld [vmem:[%s275 + $0x20] sm:$0xff]
        %v319 = vld [vmem:[%s275 + $0x28] sm:$0xff]
        %v320 = vld [vmem:[%s275 + $0x30] sm:$0xff]
        %v321 = vld [vmem:[%s275 + $0x38] sm:$0xff]
        %v322 = vld [vmem:[%s275 + $0x40] sm:$0xff]
        %v323 = vld [vmem:[%s275 + $0x48] sm:$0xff]
        %v324 = vld [vmem:[%s275 + $0x50] sm:$0xff]
        %v325 = vld [vmem:[%s275 + $0x58] sm:$0xff]
        %v326 = vld [vmem:[%s275 + $0x60] sm:$0xff]
        %v327 = vld [vmem:[%s275 + $0x68] sm:$0xff]
        %v328 = vld [vmem:[%s275 + $0x70] sm:$0xff]
        %v329 = vld [vmem:[%s275 + $0x78] sm:$0xff]
        %v330 = vld [vmem:[%s284] sm:$0x3]
        %p331 = scmp.eq.s32.totalorder %s26, 0
        // Predicated region
        $region53: #{tpu_custom_call.1} parent=35 // pred_check
          %p332 = pneg %p331
        $region54: #{tpu_custom_call.1} parent=35 // pred_check_branch
          %334 = sbr.rel (%p332) target = $region56
        $region55: #{tpu_custom_call.1} parent=35 // pred_region
          %p335 = scmp.eq.s32.totalorder %s25, 0
          // Predicated region
          $region57: #{tpu_custom_call.1} parent=55 // pred_check
            %p336 = pneg %p335
          $region58: #{tpu_custom_call.1} parent=55 // pred_check_branch
            %338 = sbr.rel (%p336) target = $region60
          $region59: #{tpu_custom_call.1} parent=55 // pred_region
            %v339 = vld [vmem:[#allocation5] sm:$0xff]
            %v340 = vld [vmem:[#allocation5 + $0x8] sm:$0xff]
            %341 = vst [vmem:[#allocation2] sm:$0xff] %v339
            %342 = vst [vmem:[#allocation2 + $0x8] sm:$0xff] %v340
          $region60: #{tpu_custom_call.1} parent=55 // pred_fallthru
            _
          %v343 = vld [vmem:[#allocation2] sm:$0xff]
          %v344 = vld [vmem:[#allocation2 + $0x8] sm:$0xff]
          %345 = vmatprep.subr.mxu0 0.0
          %346 = vmatpush1.msra.mxu0 %v329
          %347 = vmatprep.subr.mxu0 0.0
          %348 = vmatpush1.msra.mxu0 %v328
          %349 = vmatprep.subr.mxu0 0.0
          %350 = vmatpush1.msra.mxu0 %v327
          %351 = vmatprep.subr.mxu0 0.0
          %352 = vmatpush1.msra.mxu0 %v326
          %353 = vmatprep.subr.mxu0 0.0
          %354 = vmatpush1.msra.mxu0 %v325
          %355 = vmatprep.subr.mxu0 0.0
          %356 = vmatpush1.msra.mxu0 %v324
          %357 = vmatprep.subr.mxu0 0.0
          %358 = vmatpush1.msra.mxu0 %v323
          %359 = vmatprep.subr.mxu0 0.0
          %360 = vmatpush1.msra.mxu0 %v322
          %361 = vmatprep.subr.mxu0 0.0
          %362 = vmatpush1.msra.mxu0 %v321
          %363 = vmatprep.subr.mxu0 0.0
          %364 = vmatpush1.msra.mxu0 %v320
          %365 = vmatprep.subr.mxu0 0.0
          %366 = vmatpush1.msra.mxu0 %v319
          %367 = vmatprep.subr.mxu0 0.0
          %368 = vmatpush1.msra.mxu0 %v318
          %369 = vmatprep.subr.mxu0 0.0
          %370 = vmatpush1.msra.mxu0 %v317
          %371 = vmatprep.subr.mxu0 0.0
          %372 = vmatpush1.msra.mxu0 %v316
          %373 = vmatprep.subr.mxu0 0.0
          %374 = vmatpush1.msra.mxu0 %v315
          %375 = vmatprep.subr.mxu0 0.0
          %376 = vmatpush1.msra.mxu0 %v314
          %377 = vmatprep.subr.mxu0 0.0
          %378 = vmatpush2.msra.mxu0 0.0
          %379 = vmatprep.subr.mxu0 0.0
          %380 = vmatpush2.msra.mxu0 0.0
          %381 = vmatprep.subr.mxu0 0.0
          %382 = vmatpush2.msra.mxu0 0.0
          %383 = vmatprep.subr.mxu0 0.0
          %384 = vmatpush2.msra.mxu0 0.0
          %385 = vmatprep.subr.mxu0 0.0
          %386 = vmatpush2.msra.mxu0 0.0
          %387 = vmatprep.subr.mxu0 0.0
          %388 = vmatpush2.msra.mxu0 0.0
          %389 = vmatprep.subr.mxu0 0.0
          %390 = vmatpush2.msra.mxu0 0.0
          %391 = vmatprep.subr.mxu0 0.0
          %392 = vmatpush2.msra.mxu0 0.0
          %393 = vmatprep.subr.mxu0 0.0
          %394 = vmatpush2.msra.mxu0 0.0
          %395 = vmatprep.subr.mxu0 0.0
          %396 = vmatpush2.msra.mxu0 0.0
          %397 = vmatprep.subr.mxu0 0.0
          %398 = vmatpush2.msra.mxu0 0.0
          %399 = vmatprep.subr.mxu0 0.0
          %400 = vmatpush2.msra.mxu0 0.0
          %401 = vmatprep.subr.mxu0 0.0
          %402 = vmatpush2.msra.mxu0 0.0
          %403 = vmatprep.subr.mxu0 0.0
          %404 = vmatpush2.msra.mxu0 0.0
          %405 = vmatprep.subr.mxu0 0.0
          %406 = vmatpush2.msra.mxu0 0.0
          %407 = vmatprep.subr.mxu0 0.0
          %408 = vmatpush2.msra.mxu0 0.0
          %409 = vmatprep.mubr.f32.mxu0 0.0
          %410 = vmatmul.mubr.f32.gmra.mxu0 %v343
          %v411 = vpop.f32.mrf.mxu0
          %v412 = vadd.f32 0.0, %v411
          %v413 = vpop.f32.mrf.mxu0
          %414 = vmatprep.mubr.f32.mxu0 0.0
          %415 = vmatmul.mubr.f32.gmra.mxu0 %v344
          %v416 = vpop.f32.mrf.mxu0
          %v417 = vadd.f32 0.0, %v416
          %v418 = vpop.f32.mrf.mxu0
          %419 = vdwg.mxu0
          %420 = vst [vmem:[#allocation3] sm:$0xff] %v412
          %421 = vst [vmem:[#allocation3 + $0x8] sm:$0xff] %v417
          %v423 = vrot.slane %v330, 1
          %425 = vmatprep.subr.mxu0 0.0
          %426 = vmatpush1.xpose.msra.mxu0 0.0
          %427 = vmatprep.subr.mxu0 0.0
          %428 = vmatpush1.xpose.msra.mxu0 0.0
          %429 = vmatprep.subr.mxu0 0.0
          %430 = vmatpush1.xpose.msra.mxu0 0.0
          %431 = vmatprep.subr.mxu0 0.0
          %432 = vmatpush1.xpose.msra.mxu0 0.0
          %433 = vmatprep.subr.mxu0 0.0
          %434 = vmatpush1.xpose.msra.mxu0 0.0
          %435 = vmatprep.subr.mxu0 0.0
          %436 = vmatpush1.xpose.msra.mxu0 0.0
          %437 = vmatprep.subr.mxu0 0.0
          %438 = vmatpush1.xpose.msra.mxu0 0.0
          %439 = vmatprep.subr.mxu0 0.0
          %440 = vmatpush1.xpose.msra.mxu0 0.0
          %441 = vmatprep.subr.mxu0 0.0
          %442 = vmatpush1.xpose.msra.mxu0 0.0
          %443 = vmatprep.subr.mxu0 0.0
          %444 = vmatpush1.xpose.msra.mxu0 0.0
          %445 = vmatprep.subr.mxu0 0.0
          %446 = vmatpush1.xpose.msra.mxu0 0.0
          %447 = vmatprep.subr.mxu0 0.0
          %448 = vmatpush1.xpose.msra.mxu0 0.0
          %449 = vmatprep.subr.mxu0 0.0
          %450 = vmatpush1.xpose.msra.mxu0 0.0
          %451 = vmatprep.subr.mxu0 0.0
          %452 = vmatpush1.xpose.msra.mxu0 0.0
          %453 = vmatprep.subr.mxu0 0.0
          %454 = vmatpush1.xpose.msra.mxu0 %v417
          %455 = vmatprep.subr.mxu0 0.0
          %456 = vmatpush1.xpose.msra.mxu0 %v412
          %457 = vmatprep.subr.mxu0 0.0
          %458 = vmatpush2.xpose.msra.mxu0 0.0
          %459 = vmatprep.subr.mxu0 0.0
          %460 = vmatpush2.xpose.msra.mxu0 0.0
          %461 = vmatprep.subr.mxu0 0.0
          %462 = vmatpush2.xpose.msra.mxu0 0.0
          %463 = vmatprep.subr.mxu0 0.0
          %464 = vmatpush2.xpose.msra.mxu0 0.0
          %465 = vmatprep.subr.mxu0 0.0
          %466 = vmatpush2.xpose.msra.mxu0 0.0
          %467 = vmatprep.subr.mxu0 0.0
          %468 = vmatpush2.xpose.msra.mxu0 0.0
          %469 = vmatprep.subr.mxu0 0.0
          %470 = vmatpush2.xpose.msra.mxu0 0.0
          %471 = vmatprep.subr.mxu0 0.0
          %472 = vmatpush2.xpose.msra.mxu0 0.0
          %473 = vmatprep.subr.mxu0 0.0
          %474 = vmatpush2.xpose.msra.mxu0 0.0
          %475 = vmatprep.subr.mxu0 0.0
          %476 = vmatpush2.xpose.msra.mxu0 0.0
          %477 = vmatprep.subr.mxu0 0.0
          %478 = vmatpush2.xpose.msra.mxu0 0.0
          %479 = vmatprep.subr.mxu0 0.0
          %480 = vmatpush2.xpose.msra.mxu0 0.0
          %481 = vmatprep.subr.mxu0 0.0
          %482 = vmatpush2.xpose.msra.mxu0 0.0
          %483 = vmatprep.subr.mxu0 0.0
          %484 = vmatpush2.xpose.msra.mxu0 0.0
          %485 = vmatprep.subr.mxu0 0.0
          %486 = vmatpush2.xpose.msra.mxu0 0.0
          %487 = vmatprep.subr.mxu0 0.0
          %488 = vmatpush2.xpose.msra.mxu0 0.0
          %489 = vmatprep.mubr.f32.mxu0 0.0
          %490 = vmatmul.mubr.f32.gmra.mxu0 %v423
          %v491 = vpop.f32.mrf.mxu0
          %v492 = vadd.f32 0.0, %v491
          %v493 = vpop.f32.mrf.mxu0
          %494 = vdwg.mxu0
          %vm495 = vcmask 122880
          %496 = vst.msk [vmem:[#allocation4] sm:$0x1] %vm495, %v492
        $region56: #{tpu_custom_call.1} parent=35 // pred_fallthru
          _
        %s497 = smul.u32 %s26, 16
        %v498 = vld [vmem:[#allocation3] sm:$0xff]
        %v499 = vld [vmem:[#allocation3 + $0x8] sm:$0xff]
        %s500 = scalar_lea.vmem [#allocation3], %s497
        %v501 = vld [vmem:[%s500] sm:$0xff]
        %v502 = vld [vmem:[%s500 + $0x8] sm:$0xff]
        %v503 = vlaneseq
        %v504 = vshrl.u32 %v503, 7
        %v505 = vsub.s32 0, %v504
        %v506 = vrot.slane %v330, %v505
        %v507 = vmul.f32 %v501, %v506
        %v508 = vmul.f32 %v502, %v506
        %509 = vadd.xlane.f32.xlu0 %v507
        %v510 = vpop.xlane.xlu0 %509
        %511 = vadd.xlane.f32.xlu0 %v508
        %v512 = vpop.xlane.xlu0 %511
        %v513 = vld [vmem:[#allocation4] sm:$0x1]
        %v515 = vlaneseq
        %v516 = vshrl.u32 %v515, 7
        %v517 = vsub.s32 0, %v516
        %v518 = vrot.slane %v513, %v517
        %v520 = vadd.f32 %v510, %v518
        %v521 = vadd.f32 %v512, %v518
        %v522 = vmul.f32 %v520, 0.2
        %v523 = vmul.f32 %v521, 0.2
        %v524 = vmax.f32 %v520, %v522
        %v525 = vmax.f32 %v521, %v523
        %v526 = vld [vmem:[#allocation8] sm:$0x3]
        %v527 = vld [vmem:[#allocation8 + $0x2] sm:$0x3]
        %vm528 = vnez %v526
        %vm529 = vnez %v527
        %v530 = vsel %vm528, 16843009, 0
        %v531 = vsel %vm529, 16843009, 0
        %v532 = vunpack.c.0.s8 %v530
        %v533 = vunpack.c.0.s8 %v531
        %vm534 = vcmp.ne.s32.totalorder %v532, 0
        %vm535 = vcmp.ne.s32.totalorder %v533, 0
        %v536 = vsel %vm534, %v524, -9e+16
        %v537 = vsel %vm535, %v525, -9e+16
        %vm538 = vcmask 130048
        %v539 = vsel %vm538, %v536, -inf
        %540 = vmax.xlane.f32.xlu0 %v539
        %v541 = vpop.xlane.xlu0 %540
        %v542 = vsel %vm538, %v537, -inf
        %543 = vmax.xlane.f32.xlu0 %v542
        %v544 = vpop.xlane.xlu0 %543
        %v545 = vsub.f32 %v536, %v541
        %v546 = vsub.f32 %v537, %v544
        %v547 = vmul.f32 %v545, 1.442695
        %v548 = vpow.pop %v547
        %v549 = vmul.f32 %v546, 1.442695
        %v550 = vpow.pop %v549
        %v551 = vsel %vm538, %v548, 0.0
        %552 = vadd.xlane.f32.xlu0 %v551
        %v553 = vpop.xlane.xlu0 %552
        %v554 = vsel %vm538, %v550, 0.0
        %555 = vadd.xlane.f32.xlu0 %v554
        %v556 = vpop.xlane.xlu0 %555
        %v557 = vrcp.pop %v553
        %v558 = vmul.f32 %v548, %v557
        %v559 = vrcp.pop %v556
        %v560 = vmul.f32 %v550, %v559
        %v562 = vsel %vm538, %v558, 0
        %v565 = vsel %vm538, %v560, 0
        %567 = vmatprep.subr.mxu0 0.0
        %568 = vmatpush1.msra.mxu0 0.0
        %569 = vmatprep.subr.mxu0 0.0
        %570 = vmatpush1.msra.mxu0 0.0
        %571 = vmatprep.subr.mxu0 0.0
        %572 = vmatpush1.msra.mxu0 0.0
        %573 = vmatprep.subr.mxu0 0.0
        %574 = vmatpush1.msra.mxu0 0.0
        %575 = vmatprep.subr.mxu0 0.0
        %576 = vmatpush1.msra.mxu0 0.0
        %577 = vmatprep.subr.mxu0 0.0
        %578 = vmatpush1.msra.mxu0 0.0
        %579 = vmatprep.subr.mxu0 0.0
        %580 = vmatpush1.msra.mxu0 0.0
        %581 = vmatprep.subr.mxu0 0.0
        %582 = vmatpush1.msra.mxu0 0.0
        %583 = vmatprep.subr.mxu0 0.0
        %584 = vmatpush1.msra.mxu0 0.0
        %585 = vmatprep.subr.mxu0 0.0
        %586 = vmatpush1.msra.mxu0 0.0
        %587 = vmatprep.subr.mxu0 0.0
        %588 = vmatpush1.msra.mxu0 0.0
        %589 = vmatprep.subr.mxu0 0.0
        %590 = vmatpush1.msra.mxu0 0.0
        %591 = vmatprep.subr.mxu0 0.0
        %592 = vmatpush1.msra.mxu0 0.0
        %593 = vmatprep.subr.mxu0 0.0
        %594 = vmatpush1.msra.mxu0 0.0
        %595 = vmatprep.subr.mxu0 0.0
        %596 = vmatpush1.msra.mxu0 %v499
        %597 = vmatprep.subr.mxu0 0.0
        %598 = vmatpush1.msra.mxu0 %v498
        %599 = vmatprep.subr.mxu0 0.0
        %600 = vmatpush2.msra.mxu0 0.0
        %601 = vmatprep.subr.mxu0 0.0
        %602 = vmatpush2.msra.mxu0 0.0
        %603 = vmatprep.subr.mxu0 0.0
        %604 = vmatpush2.msra.mxu0 0.0
        %605 = vmatprep.subr.mxu0 0.0
        %606 = vmatpush2.msra.mxu0 0.0
        %607 = vmatprep.subr.mxu0 0.0
        %608 = vmatpush2.msra.mxu0 0.0
        %609 = vmatprep.subr.mxu0 0.0
        %610 = vmatpush2.msra.mxu0 0.0
        %611 = vmatprep.subr.mxu0 0.0
        %612 = vmatpush2.msra.mxu0 0.0
        %613 = vmatprep.subr.mxu0 0.0
        %614 = vmatpush2.msra.mxu0 0.0
        %615 = vmatprep.subr.mxu0 0.0
        %616 = vmatpush2.msra.mxu0 0.0
        %617 = vmatprep.subr.mxu0 0.0
        %618 = vmatpush2.msra.mxu0 0.0
        %619 = vmatprep.subr.mxu0 0.0
        %620 = vmatpush2.msra.mxu0 0.0
        %621 = vmatprep.subr.mxu0 0.0
        %622 = vmatpush2.msra.mxu0 0.0
        %623 = vmatprep.subr.mxu0 0.0
        %624 = vmatpush2.msra.mxu0 0.0
        %625 = vmatprep.subr.mxu0 0.0
        %626 = vmatpush2.msra.mxu0 0.0
        %627 = vmatprep.subr.mxu0 0.0
        %628 = vmatpush2.msra.mxu0 0.0
        %629 = vmatprep.subr.mxu0 0.0
        %630 = vmatpush2.msra.mxu0 0.0
        %631 = vmatprep.mubr.f32.mxu0 0.0
        %632 = vmatmul.mubr.f32.gmra.mxu0 %v562
        %v633 = vpop.f32.mrf.mxu0
        %v634 = vadd.f32 0.0, %v633
        %v635 = vpop.f32.mrf.mxu0
        %636 = vmatprep.mubr.f32.mxu0 0.0
        %637 = vmatmul.mubr.f32.gmra.mxu0 %v565
        %v638 = vpop.f32.mrf.mxu0
        %v639 = vadd.f32 0.0, %v638
        %v640 = vpop.f32.mrf.mxu0
        %641 = vdwg.mxu0
        %s642 = scalar_lea.vmem [#allocation2], %s497
        %643 = vst [vmem:[%s642] sm:$0xff] %v634
        %644 = vst [vmem:[%s642 + $0x8] sm:$0xff] %v639
        %p645 = scmp.eq.s32.totalorder %s25, 1
        // Predicated region
        $region61: #{tpu_custom_call.1} parent=35 // pred_check
          %p646 = pneg %p645
        $region62: #{tpu_custom_call.1} parent=35 // pred_check_branch
          %648 = sbr.rel (%p646) target = $region64
        $region63: #{tpu_custom_call.1} parent=35 // pred_region
          %s649 = scalar_lea.vmem [#allocation13], %s497
          %650 = vst [vmem:[%s649] sm:$0xff] %v634
          %651 = vst [vmem:[%s649 + $0x8] sm:$0xff] %v639
        $region64: #{tpu_custom_call.1} parent=35 // pred_fallthru
          _
        %p652 = scmp.eq.s32.totalorder %s25, 3
        // Predicated region
        $region65: #{tpu_custom_call.1} parent=35 // pred_check
          %p653 = pneg %p652
        $region66: #{tpu_custom_call.1} parent=35 // pred_check_branch
          %655 = sbr.rel (%p653) target = $region68
        $region67: #{tpu_custom_call.1} parent=35 // pred_region
          %s656 = scalar_lea.vmem [#allocation12], %s497
          %657 = vst [vmem:[%s656] sm:$0xff] %v634
          %658 = vst [vmem:[%s656 + $0x8] sm:$0xff] %v639
        $region68: #{tpu_custom_call.1} parent=35 // pred_fallthru
          _
        // Predicated region
        $region69: #{tpu_custom_call.1} parent=35 // pred_check
          %p659 = pneg %p145
        $region70: #{tpu_custom_call.1} parent=35 // pred_check_branch
          %661 = sbr.rel (%p659) target = $region72
        $region71: #{tpu_custom_call.1} parent=35 // pred_region
          %s663 = ssub.s32 256, 256
          %664 = vsyncadd [#allocation7], %s663
          %s665 = sshll.u32 [#allocation12], 4
          %s666 = int_to_ptr.vmem [resolvable:$true] %s665
          %671 = dma.vmem_to_hbm [thread:$0]  %s666, 256, %s4, [#allocation7], 128, 128, 8
        $region72: #{tpu_custom_call.1} parent=35 // pred_fallthru
          _
        // Predicated region
        $region73: #{tpu_custom_call.1} parent=35 // pred_check
          %p672 = pneg %p166
        $region74: #{tpu_custom_call.1} parent=35 // pred_check_branch
          %674 = sbr.rel (%p672) target = $region76
        $region75: #{tpu_custom_call.1} parent=35 // pred_region
          %s676 = ssub.s32 256, 256
          %677 = vsyncadd [#allocation14], %s676
          %s678 = sshll.u32 [#allocation13], 4
          %s679 = int_to_ptr.vmem [resolvable:$true] %s678
          %684 = dma.vmem_to_hbm [thread:$0]  %s679, 256, %s5, [#allocation14], 128, 128, 8
        $region76: #{tpu_custom_call.1} parent=35 // pred_fallthru
          _
        // Predicated region
        $region77: #{tpu_custom_call.1} parent=35 // pred_check
          %p685 = pneg %p145
        $region78: #{tpu_custom_call.1} parent=35 // pred_check_branch
          %687 = sbr.rel (%p685) target = $region80
        $region79: #{tpu_custom_call.1} parent=35 // pred_region
          %688 = dma.done [#allocation7], 256
        $region80: #{tpu_custom_call.1} parent=35 // pred_fallthru
          _
        // Predicated region
        $region81: #{tpu_custom_call.1} parent=35 // pred_check
          %p689 = pneg %p166
        $region82: #{tpu_custom_call.1} parent=35 // pred_check_branch
          %691 = sbr.rel (%p689) target = $region84
        $region83: #{tpu_custom_call.1} parent=35 // pred_region
          %692 = dma.done [#allocation14], 256
        $region84: #{tpu_custom_call.1} parent=35 // pred_fallthru
          _
      $region36: #{tpu_custom_call.1} parent=5 // pred_fallthru
        _
      %p693 = scmp.le.s32.totalorder 2, %s16
      // Predicated region
      $region85: #{tpu_custom_call.1} parent=5 // pred_check
        %p694 = pneg %p693
      $region86: #{tpu_custom_call.1} parent=5 // pred_check_branch
        %696 = sbr.rel (%p694) target = $region88
      $region87: #{tpu_custom_call.1} parent=5 // pred_region
        %s697 = ssub.s32 %s16, 2
      $region88: #{tpu_custom_call.1} parent=5 // pred_fallthru
        _
    $region6: #{tpu_custom_call.1} parent=1 // loop_footer
      %s20 = sadd.s32 1, %s16
    $region7: #{tpu_custom_call.1} parent=1 // loop_footer_branch
      %15 = sbr.rel target = $region3
    $region8: #{tpu_custom_call.1} parent=1 // loop_exit
      _
    %698 = vsyncpa [#allocation6], 1
    %s699 = scalar_lea.sflag [#allocation6], 1
    %700 = vsyncpa %s699, 1
    %701 = vsyncpa [#allocation9], 1
    %702 = vsyncpa [#allocation7], 1
    %s703 = scalar_lea.sflag [#allocation7], 1
    %704 = vsyncpa %s703, 1
    %705 = vsyncpa [#allocation14], 1

</llo_original>
